<compile_context>
chip_gen: v7x
topology: tpu7x:2x2x1
jax: 0.10.0
libtpu: 0.0.40
codegen_flags: <defaults>
</compile_context>

<pallas_src>
import jax
import jax.numpy as jnp
from jax.experimental import pallas as pl
from jax.experimental.pallas import tpu as pltpu


# ---------------------------------------------------------------------------
# Pallas kernel: per-row streaming moments
# ---------------------------------------------------------------------------
def _make_moments_kernel(rows, cols, tr, tm):
    """Builds the kernel; masking branches are resolved at trace time."""
    need_row_mask = (rows % tr) != 0
    need_col_mask = (cols % tm) != 0

    def kernel(s_ref, t_ref, os_ref, ot_ref, oss_ref, ott_ref, ost_ref):
        k = pl.program_id(1)  # lane-tile (reduction) axis, last in the grid

        @pl.when(k == 0)
        def _init():
            os_ref[...] = jnp.zeros_like(os_ref)
            ot_ref[...] = jnp.zeros_like(ot_ref)
            oss_ref[...] = jnp.zeros_like(oss_ref)
            ott_ref[...] = jnp.zeros_like(ott_ref)
            ost_ref[...] = jnp.zeros_like(ost_ref)

        s = s_ref[...].astype(jnp.float32)
        t = t_ref[...].astype(jnp.float32)

        # Boundary tiles: contents beyond the real (rows, cols) extent are
        # undefined (the DMA is clamped to the array); zero them so they do
        # not perturb the five moment sums.  Pure VPU work, hidden under DMA.
        if need_row_mask or need_col_mask:
            mask = None
            if need_row_mask:
                rid = jax.lax.broadcasted_iota(jnp.int32, (tr, tm), 0)
                mask = rid < (rows - pl.program_id(0) * tr)
            if need_col_mask:
                cid = jax.lax.broadcasted_iota(jnp.int32, (tr, tm), 1)
                cmask = cid < (cols - k * tm)
                mask = cmask if mask is None else jnp.logical_and(mask, cmask)
            zero = jnp.zeros((), jnp.float32)
            s = jnp.where(mask, s, zero)
            t = jnp.where(mask, t, zero)

        # One pass over the tile: 3 VPU multiplies + 5 lane reductions.
        os_ref[...] += jnp.sum(s, axis=-1, keepdims=True)
        ot_ref[...] += jnp.sum(t, axis=-1, keepdims=True)
        oss_ref[...] += jnp.sum(s * s, axis=-1, keepdims=True)
        ott_ref[...] += jnp.sum(t * t, axis=-1, keepdims=True)
        ost_ref[...] += jnp.sum(s * t, axis=-1, keepdims=True)

    return kernel


def _sublane_unit(dtype) -> int:
    itemsize = int(jnp.dtype(dtype).itemsize)
    return max(8, 32 // max(itemsize, 1))  # 8 (f32), 16 (bf16), 32 (int8)


def _tile_dim(dim, unit, cap):
    """Pick a tile for one dimension.

    Prefers a multiple of `unit` that divides `dim` exactly (no boundary
    masking) as long as it is at least half of the largest allowed tile;
    otherwise returns the largest multiple of `unit` <= min(dim, cap) and the
    boundary block is handled by in-kernel masking.  If dim < unit, the full
    dimension is used (allowed by the (8,128)-or-full rule).
    """
    if dim < unit:
        return int(dim)
    cap = int(min(cap, (dim // unit) * unit))
    best_div, t = 0, unit
    while t <= cap:
        if dim % t == 0:
            best_div = t
        t += unit
    if best_div * 2 >= cap:
        return best_div
    return cap


def _pkd_moments(pred_s, pred_t, *, tile_r_max=256, tile_m_max=4096):
    """Returns per-row (row = n*C + c) f32 moment sums of length N*C."""
    n, c, h, w = pred_s.shape
    r, m = n * c, h * w

    # Free contiguous reshape -- no HBM transpose, no padding copy.
    s2 = pred_s.reshape(r, m)
    t2 = pred_t.reshape(r, m)

    unit_r = max(_sublane_unit(s2.dtype), _sublane_unit(t2.dtype))
    tr = _tile_dim(r, unit_r, tile_r_max)
    tm = _tile_dim(m, 128, tile_m_max)
    grid = (pl.cdiv(r, tr), pl.cdiv(m, tm))
    r_out = grid[0] * tr  # rows beyond r accumulate only masked zeros

    in_spec = pl.BlockSpec((tr, tm), lambda i, k: (i, k))
    out_specs = tuple(
        pl.BlockSpec((tr, 1), lambda i, k: (i, 0)) for _ in range(5))
    out_shape = tuple(
        jax.ShapeDtypeStruct((r_out, 1), jnp.float32) for _ in range(5))

    outs = pl.pallas_call(
        _make_moments_kernel(r, m, tr, tm),
        out_shape=out_shape,
        grid_spec=pltpu.PrefetchScalarGridSpec(
            num_scalar_prefetch=0,
            grid=grid,
            in_specs=[in_spec, in_spec],
            out_specs=out_specs,
        ),
        compiler_params=pltpu.CompilerParams(
            dimension_semantics=("parallel", "arbitrary"),
            vmem_limit_bytes=32 * 1024 * 1024,
        ),
    )(s2, t2)

    return tuple(o[:r, 0] for o in outs)


def _pkd_single(pred_s, pred_t):
    """One (N, C, H, W) feature pair -> scalar 0.5 * MSE(norm_S, norm_T)."""
    n, c, h, w = pred_s.shape
    m_total = n * h * w

    sum_s, sum_t, sum_ss, sum_tt, sum_st = _pkd_moments(pred_s, pred_t)

    # Fold the N batch copies of each channel (row index = n*C + c).
    def fold(v):
        return v.reshape(n, c).sum(axis=0)

    s1s, s1t = fold(sum_s), fold(sum_t)
    s2s, s2t, s2st = fold(sum_ss), fold(sum_tt), fold(sum_st)

    mc = jnp.float32(m_total)
    mean_s = s1s / mc
    mean_t = s1t / mc

    # Centered second moments.
    # TODO(synk): E[x^2]-mean^2 can lose precision when |mean| >> std; fine for
    # O(1) KD feature maps (validated against the two-pass reference below).
    css = s2s - mc * mean_s * mean_s
    ctt = s2t - mc * mean_t * mean_t
    cst = s2st - mc * mean_s * mean_t

    denom = jnp.float32(max(m_total - 1, 1))  # unbiased, matches torch .std()
    std_s = jnp.sqrt(jnp.maximum(css, 0.0) / denom)
    std_t = jnp.sqrt(jnp.maximum(ctt, 0.0) / denom)
    ds = std_s + 1e-6
    dt = std_t + 1e-6

    per_ch = css / (ds * ds) + ctt / (dt * dt) - 2.0 * cst / (ds * dt)
    mse = jnp.sum(per_ch) / jnp.float32(c * m_total)
    return mse * 0.5


def pkd_loss(preds_S, preds_T, loss_weight=1.0, resize_stu=True):
    """JAX/Pallas equivalent of PKDLoss.forward."""
    if not isinstance(preds_S, (tuple, list)):
        preds_S, preds_T = (preds_S,), (preds_T,)
    loss = jnp.float32(0.0)
    for pred_S, pred_T in zip(preds_S, preds_T):
        size_S, size_T = pred_S.shape[2:], pred_T.shape[2:]
        if size_S[0] != size_T[0]:
            # TODO(synk): jax.image.resize(bilinear, antialias=False) matches
            # F.interpolate(mode='bilinear', align_corners=False) on
            # upsampling; antialiased downsampling differs slightly.
            if resize_stu:
                pred_S = jax.image.resize(
                    pred_S, pred_S.shape[:2] + tuple(size_T),
                    method="bilinear", antialias=False)
            else:
                pred_T = jax.image.resize(
                    pred_T, pred_T.shape[:2] + tuple(size_S),
                    method="bilinear", antialias=False)
        assert pred_S.shape == pred_T.shape
        loss = loss + _pkd_single(pred_S, pred_T)
    return loss * jnp.float32(loss_weight)


# ---------------------------------------------------------------------------
# Pure-JAX reference (two-pass, direct normalization) for correctness check
# ---------------------------------------------------------------------------
def _pkd_pair_ref(pred_S, pred_T):
    def norm(x):
        n, c, h, w = x.shape
        f = jnp.transpose(x, (1, 0, 2, 3)).reshape(c, -1)
        mean = f.mean(axis=-1, keepdims=True)
        std = jnp.std(f, axis=-1, keepdims=True, ddof=1)
        return (f - mean) / (std + 1e-6)

    d = norm(pred_S) - norm(pred_T)
    return jnp.mean(d * d) * 0.5


def _pkd_loss_ref(preds_S, preds_T, loss_weight=1.0):
    if not isinstance(preds_S, (tuple, list)):
        preds_S, preds_T = (preds_S,), (preds_T,)
    loss = jnp.float32(0.0)
    for s, t in zip(preds_S, preds_T):
        loss = loss + _pkd_pair_ref(s, t)
    return loss * jnp.float32(loss_weight)


if __name__ == "__main__":
    # PKDLoss has no learnable parameters; deterministic config only.
    loss_weight = 1.0

    key = jax.random.PRNGKey(0)
    k1, k2, k3, k4, k5, k6 = jax.random.split(key, 6)
    # Three feature pairs (tuple path):
    #   1) fully (8,128)-aligned -> mask-free fast path
    #   2) C=6 -> R=12 rows, H*W=96 lanes -> row-mask + full-lane block
    #   3) H*W=400 -> lane boundary mask (tm=384, last block partially valid)
    preds_S = (
        jax.random.normal(k1, (2, 4, 16, 16), dtype=jnp.float32),
        jax.random.normal(k3, (2, 6, 8, 12), dtype=jnp.float32),
        jax.random.normal(k5, (2, 4, 20, 20), dtype=jnp.float32),
    )
    preds_T = (
        jax.random.normal(k2, (2, 4, 16, 16), dtype=jnp.float32),
        jax.random.normal(k4, (2, 6, 8, 12), dtype=jnp.float32),
        jax.random.normal(k6, (2, 4, 20, 20), dtype=jnp.float32),
    )

    loss = pkd_loss(preds_S, preds_T, loss_weight=loss_weight)
    loss = jax.block_until_ready(loss)

    ref = _pkd_loss_ref(preds_S, preds_T, loss_weight=loss_weight)
    assert jnp.allclose(loss, ref, rtol=1e-4, atol=1e-5), (loss, ref)

    print("KERNEL_OK")
</pallas_src>

<mosaic_0001>
module attributes {stable_mosaic.version = 11 : i64} {
  func.func @kernel(%arg0: i32, %arg1: i32, %arg2: memref<8x256xf32, #tpu.memory_space<vmem>>, %arg3: memref<8x256xf32, #tpu.memory_space<vmem>>, %arg4: memref<8x1xf32, #tpu.memory_space<vmem>>, %arg5: memref<8x1xf32, #tpu.memory_space<vmem>>, %arg6: memref<8x1xf32, #tpu.memory_space<vmem>>, %arg7: memref<8x1xf32, #tpu.memory_space<vmem>>, %arg8: memref<8x1xf32, #tpu.memory_space<vmem>>) attributes {dimension_semantics = [#tpu.dimension_semantics<parallel>, #tpu.dimension_semantics<arbitrary>], iteration_bounds = array<i64: 1, 1>, scalar_prefetch = 0 : i64, scratch_operands = 0 : i64, tpu.core_type = #tpu.core_type<tc>, window_params = [{transform_indices = @transform_0, window_bounds = array<i64: 8, 256>}, {transform_indices = @transform_1, window_bounds = array<i64: 8, 256>}, {transform_indices = @transform_2, window_bounds = array<i64: 8, 1>}, {transform_indices = @transform_3, window_bounds = array<i64: 8, 1>}, {transform_indices = @transform_4, window_bounds = array<i64: 8, 1>}, {transform_indices = @transform_5, window_bounds = array<i64: 8, 1>}, {transform_indices = @transform_6, window_bounds = array<i64: 8, 1>}]} {
    %c0_i32 = arith.constant 0 : i32
    %0 = arith.cmpi eq, %arg1, %c0_i32 : i32
    %1 = arith.extui %0 : i1 to i32
    %c0_i32_0 = arith.constant 0 : i32
    %2 = arith.cmpi ne, %1, %c0_i32_0 : i32
    scf.if %2 {
      %cst_28 = arith.constant 0.000000e+00 : f32
      %33 = vector.broadcast %cst_28 : f32 to vector<8x1xf32>
      %c0_29 = arith.constant 0 : index
      %c0_30 = arith.constant 0 : index
      %34 = vector.load %arg4[%c0_29, %c0_30] : memref<8x1xf32, #tpu.memory_space<vmem>>, vector<8x1xf32>
      tpu.vector_store %arg4[%c0_29, %c0_30], %33 {strides = array<i32>} : memref<8x1xf32, #tpu.memory_space<vmem>>, vector<8x1xf32>,
      %cst_31 = arith.constant 0.000000e+00 : f32
      %35 = vector.broadcast %cst_31 : f32 to vector<8x1xf32>
      %c0_32 = arith.constant 0 : index
      %c0_33 = arith.constant 0 : index
      %36 = vector.load %arg5[%c0_32, %c0_33] : memref<8x1xf32, #tpu.memory_space<vmem>>, vector<8x1xf32>
      tpu.vector_store %arg5[%c0_32, %c0_33], %35 {strides = array<i32>} : memref<8x1xf32, #tpu.memory_space<vmem>>, vector<8x1xf32>,
      %cst_34 = arith.constant 0.000000e+00 : f32
      %37 = vector.broadcast %cst_34 : f32 to vector<8x1xf32>
      %c0_35 = arith.constant 0 : index
      %c0_36 = arith.constant 0 : index
      %38 = vector.load %arg6[%c0_35, %c0_36] : memref<8x1xf32, #tpu.memory_space<vmem>>, vector<8x1xf32>
      tpu.vector_store %arg6[%c0_35, %c0_36], %37 {strides = array<i32>} : memref<8x1xf32, #tpu.memory_space<vmem>>, vector<8x1xf32>,
      %cst_37 = arith.constant 0.000000e+00 : f32
      %39 = vector.broadcast %cst_37 : f32 to vector<8x1xf32>
      %c0_38 = arith.constant 0 : index
      %c0_39 = arith.constant 0 : index
      %40 = vector.load %arg7[%c0_38, %c0_39] : memref<8x1xf32, #tpu.memory_space<vmem>>, vector<8x1xf32>
      tpu.vector_store %arg7[%c0_38, %c0_39], %39 {strides = array<i32>} : memref<8x1xf32, #tpu.memory_space<vmem>>, vector<8x1xf32>,
      %cst_40 = arith.constant 0.000000e+00 : f32
      %41 = vector.broadcast %cst_40 : f32 to vector<8x1xf32>
      %c0_41 = arith.constant 0 : index
      %c0_42 = arith.constant 0 : index
      %42 = vector.load %arg8[%c0_41, %c0_42] : memref<8x1xf32, #tpu.memory_space<vmem>>, vector<8x1xf32>
      tpu.vector_store %arg8[%c0_41, %c0_42], %41 {strides = array<i32>} : memref<8x1xf32, #tpu.memory_space<vmem>>, vector<8x1xf32>,
    } else {
    }
    %c0 = arith.constant 0 : index
    %c0_1 = arith.constant 0 : index
    %3 = vector.load %arg2[%c0, %c0_1] : memref<8x256xf32, #tpu.memory_space<vmem>>, vector<8x256xf32>
    %c0_2 = arith.constant 0 : index
    %c0_3 = arith.constant 0 : index
    %4 = vector.load %arg3[%c0_2, %c0_3] : memref<8x256xf32, #tpu.memory_space<vmem>>, vector<8x256xf32>
    %c0_4 = arith.constant 0 : index
    %c0_5 = arith.constant 0 : index
    %5 = vector.load %arg4[%c0_4, %c0_5] : memref<8x1xf32, #tpu.memory_space<vmem>>, vector<8x1xf32>
    %cst = arith.constant dense<0.000000e+00> : vector<8xf32>
    %6 = vector.multi_reduction <add>, %3, %cst [1] : vector<8x256xf32> to vector<8xf32>
    %7 = vector.shape_cast %6 : vector<8xf32> to vector<8x1xf32>
    %8 = arith.addf %5, %7 : vector<8x1xf32>
    %c0_6 = arith.constant 0 : index
    %c0_7 = arith.constant 0 : index
    %9 = vector.load %arg4[%c0_6, %c0_7] : memref<8x1xf32, #tpu.memory_space<vmem>>, vector<8x1xf32>
    tpu.vector_store %arg4[%c0_6, %c0_7], %8 {strides = array<i32>} : memref<8x1xf32, #tpu.memory_space<vmem>>, vector<8x1xf32>,
    %c0_8 = arith.constant 0 : index
    %c0_9 = arith.constant 0 : index
    %10 = vector.load %arg5[%c0_8, %c0_9] : memref<8x1xf32, #tpu.memory_space<vmem>>, vector<8x1xf32>
    %cst_10 = arith.constant dense<0.000000e+00> : vector<8xf32>
    %11 = vector.multi_reduction <add>, %4, %cst_10 [1] : vector<8x256xf32> to vector<8xf32>
    %12 = vector.shape_cast %11 : vector<8xf32> to vector<8x1xf32>
    %13 = arith.addf %10, %12 : vector<8x1xf32>
    %c0_11 = arith.constant 0 : index
    %c0_12 = arith.constant 0 : index
    %14 = vector.load %arg5[%c0_11, %c0_12] : memref<8x1xf32, #tpu.memory_space<vmem>>, vector<8x1xf32>
    tpu.vector_store %arg5[%c0_11, %c0_12], %13 {strides = array<i32>} : memref<8x1xf32, #tpu.memory_space<vmem>>, vector<8x1xf32>,
    %c0_13 = arith.constant 0 : index
    %c0_14 = arith.constant 0 : index
    %15 = vector.load %arg6[%c0_13, %c0_14] : memref<8x1xf32, #tpu.memory_space<vmem>>, vector<8x1xf32>
    %16 = arith.mulf %3, %3 : vector<8x256xf32>
    %cst_15 = arith.constant dense<0.000000e+00> : vector<8xf32>
    %17 = vector.multi_reduction <add>, %16, %cst_15 [1] : vector<8x256xf32> to vector<8xf32>
    %18 = vector.shape_cast %17 : vector<8xf32> to vector<8x1xf32>
    %19 = arith.addf %15, %18 : vector<8x1xf32>
    %c0_16 = arith.constant 0 : index
    %c0_17 = arith.constant 0 : index
    %20 = vector.load %arg6[%c0_16, %c0_17] : memref<8x1xf32, #tpu.memory_space<vmem>>, vector<8x1xf32>
    tpu.vector_store %arg6[%c0_16, %c0_17], %19 {strides = array<i32>} : memref<8x1xf32, #tpu.memory_space<vmem>>, vector<8x1xf32>,
    %c0_18 = arith.constant 0 : index
    %c0_19 = arith.constant 0 : index
    %21 = vector.load %arg7[%c0_18, %c0_19] : memref<8x1xf32, #tpu.memory_space<vmem>>, vector<8x1xf32>
    %22 = arith.mulf %4, %4 : vector<8x256xf32>
    %cst_20 = arith.constant dense<0.000000e+00> : vector<8xf32>
    %23 = vector.multi_reduction <add>, %22, %cst_20 [1] : vector<8x256xf32> to vector<8xf32>
    %24 = vector.shape_cast %23 : vector<8xf32> to vector<8x1xf32>
    %25 = arith.addf %21, %24 : vector<8x1xf32>
    %c0_21 = arith.constant 0 : index
    %c0_22 = arith.constant 0 : index
    %26 = vector.load %arg7[%c0_21, %c0_22] : memref<8x1xf32, #tpu.memory_space<vmem>>, vector<8x1xf32>
    tpu.vector_store %arg7[%c0_21, %c0_22], %25 {strides = array<i32>} : memref<8x1xf32, #tpu.memory_space<vmem>>, vector<8x1xf32>,
    %c0_23 = arith.constant 0 : index
    %c0_24 = arith.constant 0 : index
    %27 = vector.load %arg8[%c0_23, %c0_24] : memref<8x1xf32, #tpu.memory_space<vmem>>, vector<8x1xf32>
    %28 = arith.mulf %3, %4 : vector<8x256xf32>
    %cst_25 = arith.constant dense<0.000000e+00> : vector<8xf32>
    %29 = vector.multi_reduction <add>, %28, %cst_25 [1] : vector<8x256xf32> to vector<8xf32>
    %30 = vector.shape_cast %29 : vector<8xf32> to vector<8x1xf32>
    %31 = arith.addf %27, %30 : vector<8x1xf32>
    %c0_26 = arith.constant 0 : index
    %c0_27 = arith.constant 0 : index
    %32 = vector.load %arg8[%c0_26, %c0_27] : memref<8x1xf32, #tpu.memory_space<vmem>>, vector<8x1xf32>
    tpu.vector_store %arg8[%c0_26, %c0_27], %31 {strides = array<i32>} : memref<8x1xf32, #tpu.memory_space<vmem>>, vector<8x1xf32>,
    return
  }
  func.func @transform_0(%arg0: i32, %arg1: i32) -> (i32, i32) {
    %c0_i32 = arith.constant 0 : i32
    return %arg0, %arg1 : i32, i32
  }
  func.func @transform_1(%arg0: i32, %arg1: i32) -> (i32, i32) {
    %c0_i32 = arith.constant 0 : i32
    return %arg0, %arg1 : i32, i32
  }
  func.func @transform_2(%arg0: i32, %arg1: i32) -> (i32, i32) {
    %c0_i32 = arith.constant 0 : i32
    %c0_i32_0 = arith.constant 0 : i32
    return %arg0, %c0_i32 : i32, i32
  }
  func.func @transform_3(%arg0: i32, %arg1: i32) -> (i32, i32) {
    %c0_i32 = arith.constant 0 : i32
    %c0_i32_0 = arith.constant 0 : i32
    return %arg0, %c0_i32 : i32, i32
  }
  func.func @transform_4(%arg0: i32, %arg1: i32) -> (i32, i32) {
    %c0_i32 = arith.constant 0 : i32
    %c0_i32_0 = arith.constant 0 : i32
    return %arg0, %c0_i32 : i32, i32
  }
  func.func @transform_5(%arg0: i32, %arg1: i32) -> (i32, i32) {
    %c0_i32 = arith.constant 0 : i32
    %c0_i32_0 = arith.constant 0 : i32
    return %arg0, %c0_i32 : i32, i32
  }
  func.func @transform_6(%arg0: i32, %arg1: i32) -> (i32, i32) {
    %c0_i32 = arith.constant 0 : i32
    %c0_i32_0 = arith.constant 0 : i32
    return %arg0, %c0_i32 : i32, i32
  }
}

</mosaic_0001>

<llo_original>
// kernel: tpu_custom_call.1
$region0: #{tpu_custom_call.1}
  #allocation0 [shape = 'u32[]', space=smem, size = 0x4, offset = 0x4, fixed_abs, tag = 'smem constant byte address 0x4 - core index']
  #allocation1 [shape = 'u32[144,128]{1,0:T(1,128)}', space=vmem, size = 0x12000, scoped, tag = 'internal scratch']
  %s0 = inlined_call_operand.hbm [shape: f32[8,256], index: 0, kind: input, shape index: {}]
  %s1 = inlined_call_operand.hbm [shape: f32[8,256], index: 1, kind: input, shape index: {}]
  %s2 = inlined_call_operand.vmem [shape: f32[8,1], index: 2, kind: output, shape index: {0}]
  %s3 = inlined_call_operand.vmem [shape: f32[8,1], index: 3, kind: output, shape index: {1}]
  %s4 = inlined_call_operand.vmem [shape: f32[8,1], index: 4, kind: output, shape index: {2}]
  %s5 = inlined_call_operand.vmem [shape: f32[8,1], index: 5, kind: output, shape index: {3}]
  %s6 = inlined_call_operand.vmem [shape: f32[8,1], index: 6, kind: output, shape index: {4}]
  %7 = xla_tuple %s2, %s3, %s4, %s5, %s6
  %s8 = sld [smem:[#allocation0]]
  $region62: #{tpu_custom_call.1} parent=0
    _
  %s10 = ssub.s32 1, %s8
  %s11 = scalar_select 0, %s10, %s8
  $region1: #{tpu_custom_call.1} parent=0
    #allocation2 [shape = 'u8[8192]{0}', space=vmem, size = 0x2000, scoped, tag = 'input window, operand 0, single buffered']
    #allocation3 [shape = 's32[1]{0}', space=sflag, size = 0x4, scoped, tag = 'scoped memory for tpu_custom_call.1']
    #allocation4 [shape = 'u8[8192]{0}', space=vmem, size = 0x2000, scoped, tag = 'input window, operand 1, single buffered']
    #allocation5 [shape = 's32[1]{0}', space=sflag, size = 0x4, scoped, tag = 'scoped memory for tpu_custom_call.1']
    %12 = vsyncpa [#allocation3], 0
    %13 = vsyncpa [#allocation5], 0
    // Predicated region
    $region2: #{tpu_custom_call.1} parent=1 // pred_check
      _
    $region3: #{tpu_custom_call.1} parent=1 // pred_check_branch
      %15 = sbr.rel (0) target = $region5
    $region4: #{tpu_custom_call.1} parent=1 // pred_region
      %s17 = ssub.s32 256, 256
      %18 = vsyncadd [#allocation3], %s17
      %s20 = sshll.u32 [#allocation2], 4
      %s21 = int_to_ptr.vmem [resolvable:$true] %s20
      %23 = dma.hbm_to_vmem [thread:$0]  %s0, 256, %s21, [#allocation3]
    $region5: #{tpu_custom_call.1} parent=1 // pred_fallthru
      _
    // Predicated region
    $region6: #{tpu_custom_call.1} parent=1 // pred_check
      _
    $region7: #{tpu_custom_call.1} parent=1 // pred_check_branch
      %25 = sbr.rel (0) target = $region9
    $region8: #{tpu_custom_call.1} parent=1 // pred_region
      %s27 = ssub.s32 256, 256
      %28 = vsyncadd [#allocation5], %s27
      %s30 = sshll.u32 [#allocation4], 4
      %s31 = int_to_ptr.vmem [resolvable:$true] %s30
      %33 = dma.hbm_to_vmem [thread:$0]  %s1, 256, %s31, [#allocation5]
    $region9: #{tpu_custom_call.1} parent=1 // pred_fallthru
      _
    // Predicated region
    $region10: #{tpu_custom_call.1} parent=1 // pred_check
      _
    $region11: #{tpu_custom_call.1} parent=1 // pred_check_branch
      %35 = sbr.rel (0) target = $region13
    $region12: #{tpu_custom_call.1} parent=1 // pred_region
      %36 = dma.done [#allocation3], 256
    $region13: #{tpu_custom_call.1} parent=1 // pred_fallthru
      _
    // Predicated region
    $region14: #{tpu_custom_call.1} parent=1 // pred_check
      _
    $region15: #{tpu_custom_call.1} parent=1 // pred_check_branch
      %38 = sbr.rel (0) target = $region17
    $region16: #{tpu_custom_call.1} parent=1 // pred_region
      %39 = dma.done [#allocation5], 256
    $region17: #{tpu_custom_call.1} parent=1 // pred_fallthru
      _
    %p40 = scmp.eq.s32.totalorder 0, 0
    // Predicated region
    $region18: #{tpu_custom_call.1} parent=1 // pred_check
      %p41 = pneg %p40
    $region19: #{tpu_custom_call.1} parent=1 // pred_check_branch
      %43 = sbr.rel (%p41) target = $region21
    $region20: #{tpu_custom_call.1} parent=1 // pred_region
      %vm44 = vcmask 7168
      %45 = vst.msk [vmem:[%s2] sm:$0xff] %vm44, 0.0
      %46 = vst.msk [vmem:[%s3] sm:$0xff] %vm44, 0.0
      %47 = vst.msk [vmem:[%s4] sm:$0xff] %vm44, 0.0
      %48 = vst.msk [vmem:[%s5] sm:$0xff] %vm44, 0.0
      %49 = vst.msk [vmem:[%s6] sm:$0xff] %vm44, 0.0
    $region21: #{tpu_custom_call.1} parent=1 // pred_fallthru
      _
    %v50 = vld [vmem:[#allocation2] sm:$0xff]
    %v51 = vld [vmem:[#allocation2 + $0x8] sm:$0xff]
    %v52 = vld [vmem:[#allocation4] sm:$0xff]
    %v53 = vld [vmem:[#allocation4 + $0x8] sm:$0xff]
    %v54 = vld [vmem:[%s2] sm:$0xff]
    %v55 = vadd.f32 %v50, %v51
    %56 = vadd.xlane.f32.xlu0 %v55
    %v57 = vpop.xlane.xlu0 %56
    %v58 = vadd.f32 %v54, %v57
    %vm59 = vcmask 7168
    %60 = vst.msk [vmem:[%s2] sm:$0xff] %vm59, %v58
    %v61 = vld [vmem:[%s3] sm:$0xff]
    %v62 = vadd.f32 %v52, %v53
    %63 = vadd.xlane.f32.xlu0 %v62
    %v64 = vpop.xlane.xlu0 %63
    %v65 = vadd.f32 %v61, %v64
    %66 = vst.msk [vmem:[%s3] sm:$0xff] %vm59, %v65
    %v67 = vld [vmem:[%s4] sm:$0xff]
    %v68 = vmul.f32 %v50, %v50
    %v69 = vmul.f32 %v51, %v51
    %v70 = vadd.f32 %v68, %v69
    %71 = vadd.xlane.f32.xlu0 %v70
    %v72 = vpop.xlane.xlu0 %71
    %v73 = vadd.f32 %v67, %v72
    %74 = vst.msk [vmem:[%s4] sm:$0xff] %vm59, %v73
    %v75 = vld [vmem:[%s5] sm:$0xff]
    %v76 = vmul.f32 %v52, %v52
    %v77 = vmul.f32 %v53, %v53
    %v78 = vadd.f32 %v76, %v77
    %79 = vadd.xlane.f32.xlu0 %v78
    %v80 = vpop.xlane.xlu0 %79
    %v81 = vadd.f32 %v75, %v80
    %82 = vst.msk [vmem:[%s5] sm:$0xff] %vm59, %v81
    %v83 = vld [vmem:[%s6] sm:$0xff]
    %v84 = vmul.f32 %v50, %v52
    %v85 = vmul.f32 %v51, %v53
    %v86 = vadd.f32 %v84, %v85
    %87 = vadd.xlane.f32.xlu0 %v86
    %v88 = vpop.xlane.xlu0 %87
    %v89 = vadd.f32 %v83, %v88
    %90 = vst.msk [vmem:[%s6] sm:$0xff] %vm59, %v89
    // Predicated region
    $region22: #{tpu_custom_call.1} parent=1 // pred_check
      _
    $region23: #{tpu_custom_call.1} parent=1 // pred_check_branch
      %92 = sbr.rel (0) target = $region25
    $region24: #{tpu_custom_call.1} parent=1 // pred_region
      _
    $region25: #{tpu_custom_call.1} parent=1 // pred_fallthru
      _
    // Predicated region
    $region26: #{tpu_custom_call.1} parent=1 // pred_check
      _
    $region27: #{tpu_custom_call.1} parent=1 // pred_check_branch
      %94 = sbr.rel (0) target = $region29
    $region28: #{tpu_custom_call.1} parent=1 // pred_region
      _
    $region29: #{tpu_custom_call.1} parent=1 // pred_fallthru
      _
    // Predicated region
    $region30: #{tpu_custom_call.1} parent=1 // pred_check
      _
    $region31: #{tpu_custom_call.1} parent=1 // pred_check_branch
      %96 = sbr.rel (0) target = $region33
    $region32: #{tpu_custom_call.1} parent=1 // pred_region
      _
    $region33: #{tpu_custom_call.1} parent=1 // pred_fallthru
      _
    // Predicated region
    $region34: #{tpu_custom_call.1} parent=1 // pred_check
      _
    $region35: #{tpu_custom_call.1} parent=1 // pred_check_branch
      %98 = sbr.rel (0) target = $region37
    $region36: #{tpu_custom_call.1} parent=1 // pred_region
      _
    $region37: #{tpu_custom_call.1} parent=1 // pred_fallthru
      _
    // Predicated region
    $region38: #{tpu_custom_call.1} parent=1 // pred_check
      _
    $region39: #{tpu_custom_call.1} parent=1 // pred_check_branch
      %100 = sbr.rel (0) target = $region41
    $region40: #{tpu_custom_call.1} parent=1 // pred_region
      _
    $region41: #{tpu_custom_call.1} parent=1 // pred_fallthru
      _
    // Predicated region
    $region42: #{tpu_custom_call.1} parent=1 // pred_check
      _
    $region43: #{tpu_custom_call.1} parent=1 // pred_check_branch
      %102 = sbr.rel (0) target = $region45
    $region44: #{tpu_custom_call.1} parent=1 // pred_region
      _
    $region45: #{tpu_custom_call.1} parent=1 // pred_fallthru
      _
    // Predicated region
    $region46: #{tpu_custom_call.1} parent=1 // pred_check
      _
    $region47: #{tpu_custom_call.1} parent=1 // pred_check_branch
      %104 = sbr.rel (0) target = $region49
    $region48: #{tpu_custom_call.1} parent=1 // pred_region
      _
    $region49: #{tpu_custom_call.1} parent=1 // pred_fallthru
      _
    // Predicated region
    $region50: #{tpu_custom_call.1} parent=1 // pred_check
      _
    $region51: #{tpu_custom_call.1} parent=1 // pred_check_branch
      %106 = sbr.rel (0) target = $region53
    $region52: #{tpu_custom_call.1} parent=1 // pred_region
      _
    $region53: #{tpu_custom_call.1} parent=1 // pred_fallthru
      _
    // Predicated region
    $region54: #{tpu_custom_call.1} parent=1 // pred_check
      _
    $region55: #{tpu_custom_call.1} parent=1 // pred_check_branch
      %108 = sbr.rel (0) target = $region57
    $region56: #{tpu_custom_call.1} parent=1 // pred_region
      _
    $region57: #{tpu_custom_call.1} parent=1 // pred_fallthru
      _
    // Predicated region
    $region58: #{tpu_custom_call.1} parent=1 // pred_check
      _
    $region59: #{tpu_custom_call.1} parent=1 // pred_check_branch
      %110 = sbr.rel (0) target = $region61
    $region60: #{tpu_custom_call.1} parent=1 // pred_region
      _
    $region61: #{tpu_custom_call.1} parent=1 // pred_fallthru
      _
    %111 = vsyncpa [#allocation3], 1
    %112 = vsyncpa [#allocation5], 1

</llo_original>
